<compile_context>
chip_gen: v7x
topology: tpu7x:2x2x1
jax: 0.10.0
libtpu: 0.0.40
codegen_flags: <defaults>
</compile_context>

<pallas_src>
import jax
import jax.numpy as jnp
from jax import lax
from jax.experimental import pallas as pl
from jax.experimental.pallas import tpu as pltpu


def _cdiv(a, b):
    return -(-a // b)


def _round_up(n, m):
    return ((n + m - 1) // m) * m


def mlp_credit_kernel(x_ref, w1_ref, b1_ref, w2_ref, b2_ref, o_ref):
    # x_ref : (TB, 23)  natural row-major tile (contiguous HBM DMA)
    # w1_ref: (128, 23) bf16, VMEM-resident (PyTorch (out, in) layout)
    # b1_ref: (128, 1)  f32
    # w2_ref: (2, 128)  bf16
    # b2_ref: (2, 1)    f32
    # o_ref : (2, TB)   f32, lane-dense -> unmasked 128-lane stores
    x = x_ref[...].astype(w1_ref.dtype)      # cheap VPU cast; no-op if bf16 input

    # fc1 in feature-major orientation: (128, 23) . (TB, 23)^T -> (128, TB).
    # Contracting both operands on their last axis is the standard q@k^T MXU
    # pattern; no explicit transpose of the x tile is materialized.
    h = lax.dot_general(
        w1_ref[...], x,
        dimension_numbers=(((1,), (1,)), ((), ())),
        preferred_element_type=jnp.float32,
    )
    z = h + b1_ref[...]                      # (128, TB) + (128, 1) lane broadcast
    # sigmoid(z) = 0.5 * tanh(z / 2) + 0.5 -- a single EUP op per element.
    s = 0.5 * jnp.tanh(0.5 * z) + 0.5

    # fc2: (2, 128) @ (128, TB) -> (2, TB), f32 accumulate.
    out = jnp.dot(w2_ref[...], s.astype(w2_ref.dtype),
                  preferred_element_type=jnp.float32)
    o_ref[...] = (out + b2_ref[...]).astype(o_ref.dtype)


def mlp_credit(x, w1, b1, w2, b2, *, tb_max=8192, compute_dtype=jnp.bfloat16):
    """x: (B, 23); w1: (128, 23); b1: (128,); w2: (2, 128); b2: (2,) -> (B, 2) f32."""
    B, in_f = x.shape
    hid = w1.shape[0]
    out_f = w2.shape[0]

    tb_max = max(128, tb_max)
    n_steps = max(1, _cdiv(B, tb_max))
    if n_steps == 1:
        tb = B                               # single exact block: no padding at all
    else:
        # Minimize dead padded rows for awkward B; lane-dense output requires
        # tb to be a multiple of 128 once there is more than one block.
        tb = _round_up(_cdiv(B, n_steps), 128)
    grid_b = _cdiv(B, tb)
    b_pad = grid_b * tb

    # Only ragged multi-block batches are padded; padded rows are sliced off
    # below and can never contaminate valid rows (no reduction over batch).
    x_in = x if b_pad == B else jnp.pad(x, ((0, b_pad - B), (0, 0)))

    # One-time tiny parameter casts/reshapes (VMEM-resident inside the kernel).
    w1c = w1.astype(compute_dtype)
    w2c = w2.astype(compute_dtype)
    b1c = b1.reshape(hid, 1).astype(jnp.float32)
    b2c = b2.reshape(out_f, 1).astype(jnp.float32)

    out_t = pl.pallas_call(
        mlp_credit_kernel,
        out_shape=jax.ShapeDtypeStruct((out_f, b_pad), jnp.float32),
        grid=(grid_b,),
        in_specs=[
            pl.BlockSpec((tb, in_f), lambda i: (i, 0)),    # streamed, HBM-contiguous
            pl.BlockSpec((hid, in_f), lambda i: (0, 0)),   # resident weights/biases
            pl.BlockSpec((hid, 1), lambda i: (0, 0)),
            pl.BlockSpec((out_f, hid), lambda i: (0, 0)),
            pl.BlockSpec((out_f, 1), lambda i: (0, 0)),
        ],
        out_specs=pl.BlockSpec((out_f, tb), lambda i: (0, i)),
        compiler_params=pltpu.CompilerParams(
            dimension_semantics=("parallel",),   # megacore sharding where available
            vmem_limit_bytes=64 * 1024 * 1024,
        ),
    )(x_in, w1c, b1c, w2c, b2c)

    # (2, b_pad) -> (B, 2); transposing the 2-logit output is ~8 B/elem, negligible.
    return out_t[:, :B].T


def init_params(key):
    """nn.Linear-style init (uniform +-1/sqrt(fan_in)), PyTorch (out, in) layout."""
    k1, k2, k3, k4 = jax.random.split(key, 4)
    lim1 = 1.0 / jnp.sqrt(23.0)
    lim2 = 1.0 / jnp.sqrt(128.0)
    w1 = jax.random.uniform(k1, (128, 23), jnp.float32, -lim1, lim1)
    b1 = jax.random.uniform(k2, (128,), jnp.float32, -lim1, lim1)
    w2 = jax.random.uniform(k3, (2, 128), jnp.float32, -lim2, lim2)
    b2 = jax.random.uniform(k4, (2,), jnp.float32, -lim2, lim2)
    return w1, b1, w2, b2


def reference(x, w1, b1, w2, b2):
    h = jax.nn.sigmoid(x @ w1.T + b1)
    return h @ w2.T + b2


if __name__ == "__main__":
    key = jax.random.PRNGKey(0)
    kx, kp = jax.random.split(key)
    w1, b1, w2, b2 = init_params(kp)

    # bf16 matmuls (f32 accumulate) vs pure-f32 reference: loose but meaningful
    # tolerance (a layout/bias bug would produce O(0.5) errors).
    tol = dict(atol=3e-2, rtol=3e-2)

    # 1) Small batch: single exact block (tb == B), no padding, no extra copies.
    B = 8
    x = jax.random.normal(kx, (B, 23), jnp.float32)
    out = jax.block_until_ready(mlp_credit(x, w1, b1, w2, b2))
    assert out.shape == (B, 2)
    assert jnp.allclose(out, reference(x, w1, b1, w2, b2), **tol), "mismatch (B=8)"

    # 2) Multi-step grid, exactly divisible: 2 steps of tb=128, no padding.
    B2 = 256
    x2 = jax.random.normal(jax.random.fold_in(kx, 1), (B2, 23), jnp.float32)
    out2 = jax.block_until_ready(mlp_credit(x2, w1, b1, w2, b2, tb_max=128))
    assert out2.shape == (B2, 2)
    assert jnp.allclose(out2, reference(x2, w1, b1, w2, b2), **tol), "mismatch (B=256)"

    # 3) Multi-step grid with a ragged tail (B=300 -> 3 steps of tb=128, padded).
    B3 = 300
    x3 = jax.random.normal(jax.random.fold_in(kx, 2), (B3, 23), jnp.float32)
    out3 = jax.block_until_ready(mlp_credit(x3, w1, b1, w2, b2, tb_max=128))
    assert out3.shape == (B3, 2)
    assert jnp.allclose(out3, reference(x3, w1, b1, w2, b2), **tol), "mismatch (B=300)"

    print("KERNEL_OK")
</pallas_src>

<mosaic_0001>
module attributes {stable_mosaic.version = 11 : i64} {
  func.func @mlp_credit_kernel(%arg0: i32, %arg1: memref<8x23xf32, #tpu.memory_space<vmem>>, %arg2: memref<128x23xbf16, #tpu.memory_space<vmem>>, %arg3: memref<128x1xf32, #tpu.memory_space<vmem>>, %arg4: memref<2x128xbf16, #tpu.memory_space<vmem>>, %arg5: memref<2x1xf32, #tpu.memory_space<vmem>>, %arg6: memref<2x8xf32, #tpu.memory_space<vmem>>) attributes {dimension_semantics = [#tpu.dimension_semantics<parallel>], iteration_bounds = array<i64: 1>, scalar_prefetch = 0 : i64, scratch_operands = 0 : i64, tpu.core_type = #tpu.core_type<tc>, window_params = [{transform_indices = @transform_0, window_bounds = array<i64: 8, 23>}, {pipeline_mode = #tpu.pipeline_mode<synchronous>, transform_indices = @transform_1, window_bounds = array<i64: 128, 23>}, {pipeline_mode = #tpu.pipeline_mode<synchronous>, transform_indices = @transform_2, window_bounds = array<i64: 128, 1>}, {pipeline_mode = #tpu.pipeline_mode<synchronous>, transform_indices = @transform_3, window_bounds = array<i64: 2, 128>}, {pipeline_mode = #tpu.pipeline_mode<synchronous>, transform_indices = @transform_4, window_bounds = array<i64: 2, 1>}, {transform_indices = @transform_5, window_bounds = array<i64: 2, 8>}]} {
    %c0 = arith.constant 0 : index
    %c0_0 = arith.constant 0 : index
    %0 = vector.load %arg1[%c0, %c0_0] : memref<8x23xf32, #tpu.memory_space<vmem>>, vector<8x23xf32>
    %1 = arith.truncf %0 : vector<8x23xf32> to vector<8x23xbf16>
    %c0_1 = arith.constant 0 : index
    %c0_2 = arith.constant 0 : index
    %2 = vector.load %arg2[%c0_1, %c0_2] : memref<128x23xbf16, #tpu.memory_space<vmem>>, vector<128x23xbf16>
    %cst = arith.constant dense<0.000000e+00> : vector<128x8xf32>
    %3 = tpu.matmul %2, %1, %cst {dimension_numbers = #tpu.dot_dimension_numbers<[1], [1], [0], [0], [0, 0, 1, 0], [], []>} : vector<128x23xbf16>, vector<8x23xbf16>, vector<128x8xf32> -> vector<128x8xf32>
    %c0_3 = arith.constant 0 : index
    %c0_4 = arith.constant 0 : index
    %4 = vector.load %arg3[%c0_3, %c0_4] : memref<128x1xf32, #tpu.memory_space<vmem>>, vector<128x1xf32>
    %5 = vector.broadcast %4 : vector<128x1xf32> to vector<128x8xf32>
    %6 = arith.addf %3, %5 : vector<128x8xf32>
    %cst_5 = arith.constant 5.000000e-01 : f32
    %7 = vector.broadcast %cst_5 : f32 to vector<128x8xf32>
    %8 = arith.mulf %7, %6 : vector<128x8xf32>
    %9 = math.tanh %8 : vector<128x8xf32>
    %cst_6 = arith.constant 5.000000e-01 : f32
    %10 = vector.broadcast %cst_6 : f32 to vector<128x8xf32>
    %11 = arith.mulf %10, %9 : vector<128x8xf32>
    %cst_7 = arith.constant 5.000000e-01 : f32
    %12 = vector.broadcast %cst_7 : f32 to vector<128x8xf32>
    %13 = arith.addf %11, %12 : vector<128x8xf32>
    %c0_8 = arith.constant 0 : index
    %c0_9 = arith.constant 0 : index
    %14 = vector.load %arg4[%c0_8, %c0_9] : memref<2x128xbf16, #tpu.memory_space<vmem>>, vector<2x128xbf16>
    %15 = arith.truncf %13 : vector<128x8xf32> to vector<128x8xbf16>
    %cst_10 = arith.constant dense<0.000000e+00> : vector<2x8xf32>
    %16 = tpu.matmul %14, %15, %cst_10 {dimension_numbers = #tpu.dot_dimension_numbers<[1], [0], [0], [1], [0, 0, 1, 1], [], []>} : vector<2x128xbf16>, vector<128x8xbf16>, vector<2x8xf32> -> vector<2x8xf32>
    %c0_11 = arith.constant 0 : index
    %c0_12 = arith.constant 0 : index
    %17 = vector.load %arg5[%c0_11, %c0_12] : memref<2x1xf32, #tpu.memory_space<vmem>>, vector<2x1xf32>
    %18 = vector.broadcast %17 : vector<2x1xf32> to vector<2x8xf32>
    %19 = arith.addf %16, %18 : vector<2x8xf32>
    %c0_13 = arith.constant 0 : index
    %c0_14 = arith.constant 0 : index
    %20 = vector.load %arg6[%c0_13, %c0_14] : memref<2x8xf32, #tpu.memory_space<vmem>>, vector<2x8xf32>
    tpu.vector_store %arg6[%c0_13, %c0_14], %19 {strides = array<i32>} : memref<2x8xf32, #tpu.memory_space<vmem>>, vector<2x8xf32>,
    return
  }
  func.func @transform_0(%arg0: i32) -> (i32, i32) {
    %c0_i32 = arith.constant 0 : i32
    %c0_i32_0 = arith.constant 0 : i32
    return %arg0, %c0_i32 : i32, i32
  }
  func.func @transform_1(%arg0: i32) -> (i32, i32) {
    %c0_i32 = arith.constant 0 : i32
    %c0_i32_0 = arith.constant 0 : i32
    %c0_i32_1 = arith.constant 0 : i32
    return %c0_i32, %c0_i32_0 : i32, i32
  }
  func.func @transform_2(%arg0: i32) -> (i32, i32) {
    %c0_i32 = arith.constant 0 : i32
    %c0_i32_0 = arith.constant 0 : i32
    %c0_i32_1 = arith.constant 0 : i32
    return %c0_i32, %c0_i32_0 : i32, i32
  }
  func.func @transform_3(%arg0: i32) -> (i32, i32) {
    %c0_i32 = arith.constant 0 : i32
    %c0_i32_0 = arith.constant 0 : i32
    %c0_i32_1 = arith.constant 0 : i32
    return %c0_i32, %c0_i32_0 : i32, i32
  }
  func.func @transform_4(%arg0: i32) -> (i32, i32) {
    %c0_i32 = arith.constant 0 : i32
    %c0_i32_0 = arith.constant 0 : i32
    %c0_i32_1 = arith.constant 0 : i32
    return %c0_i32, %c0_i32_0 : i32, i32
  }
  func.func @transform_5(%arg0: i32) -> (i32, i32) {
    %c0_i32 = arith.constant 0 : i32
    %c0_i32_0 = arith.constant 0 : i32
    return %c0_i32, %arg0 : i32, i32
  }
}

</mosaic_0001>

<llo_original>
// kernel: tpu_custom_call.1
$region0: #{tpu_custom_call.1}
  #allocation0 [shape = 'u32[]', space=smem, size = 0x4, offset = 0x4, fixed_abs, tag = 'smem constant byte address 0x4 - core index']
  #allocation1 [shape = 'u32[144,128]{1,0:T(1,128)}', space=vmem, size = 0x12000, scoped, tag = 'internal scratch']
  %s0 = inlined_call_operand.hbm [shape: f32[8,23], index: 0, kind: input, shape index: {}]
  %s1 = inlined_call_operand.hbm [shape: bf16[128,23], index: 1, kind: input, shape index: {}]
  %s2 = inlined_call_operand.hbm [shape: f32[128,1], index: 2, kind: input, shape index: {}]
  %s3 = inlined_call_operand.hbm [shape: bf16[2,128], index: 3, kind: input, shape index: {}]
  %s4 = inlined_call_operand.hbm [shape: f32[2,1], index: 4, kind: input, shape index: {}]
  %s5 = inlined_call_operand.hbm [shape: f32[2,8], index: 5, kind: output, shape index: {}]
  %s6 = sld [smem:[#allocation0]]
  $region50: #{tpu_custom_call.1} parent=0
    _
  %s8 = ssub.s32 1, %s6
  %s9 = scalar_select 0, %s8, %s6
  $region1: #{tpu_custom_call.1} parent=0
    #allocation2 [shape = 'u8[4096]{0}', space=vmem, size = 0x1000, scoped, tag = 'input window, operand 0, single buffered']
    #allocation3 [shape = 's32[1]{0}', space=sflag, size = 0x4, scoped, tag = 'scoped memory for tpu_custom_call.1']
    #allocation4 [shape = 's32[1]{0}', space=sflag, size = 0x4, scoped, tag = 'scoped memory for tpu_custom_call.1']
    #allocation5 [shape = 'u8[32768]{0}', space=vmem, size = 0x8000, scoped, tag = 'input window, operand 1, single buffered']
    #allocation6 [shape = 's32[1]{0}', space=sflag, size = 0x4, scoped, tag = 'scoped memory for tpu_custom_call.1']
    #allocation7 [shape = 'u8[65536]{0}', space=vmem, size = 0x10000, scoped, tag = 'input window, operand 2, single buffered']
    #allocation8 [shape = 'u8[512]{0}', space=vmem, size = 0x400, scoped, tag = 'input window, operand 3, single buffered']
    #allocation9 [shape = 's32[1]{0}', space=sflag, size = 0x4, scoped, tag = 'scoped memory for tpu_custom_call.1']
    #allocation10 [shape = 'u8[1024]{0}', space=vmem, size = 0x400, scoped, tag = 'input window, operand 4, single buffered']
    #allocation11 [shape = 'u8[1024]{0}', space=vmem, size = 0x400, scoped, tag = 'output window, operand 0, single buffered']
    %10 = vsyncpa [#allocation3], 0
    %11 = vsyncpa [#allocation6], 0
    %12 = vsyncpa [#allocation9], 0
    %13 = vsyncpa [#allocation4], 0
    // Predicated region
    $region2: #{tpu_custom_call.1} parent=1 // pred_check
      _
    $region3: #{tpu_custom_call.1} parent=1 // pred_check_branch
      %15 = sbr.rel (0) target = $region5
    $region4: #{tpu_custom_call.1} parent=1 // pred_region
      %s17 = ssub.s32 128, 128
      %18 = vsyncadd [#allocation3], %s17
      %s20 = sshll.u32 [#allocation2], 4
      %s21 = int_to_ptr.vmem [resolvable:$true] %s20
      %23 = dma.hbm_to_vmem [thread:$0]  %s0, 128, %s21, [#allocation3]
    $region5: #{tpu_custom_call.1} parent=1 // pred_fallthru
      _
    // Predicated region
    $region6: #{tpu_custom_call.1} parent=1 // pred_check
      _
    $region7: #{tpu_custom_call.1} parent=1 // pred_check_branch
      %25 = sbr.rel (0) target = $region9
    $region8: #{tpu_custom_call.1} parent=1 // pred_region
      %s27 = ssub.s32 1024, 1024
      %28 = vsyncadd [#allocation6], %s27
      %s29 = sshll.u32 [#allocation5], 4
      %s30 = int_to_ptr.vmem [resolvable:$true] %s29
      %35 = dma.hbm_to_vmem [thread:$0]  %s1, 1024, %s30, [#allocation6], 64, 64, 4
    $region9: #{tpu_custom_call.1} parent=1 // pred_fallthru
      _
    // Predicated region
    $region10: #{tpu_custom_call.1} parent=1 // pred_check
      _
    $region11: #{tpu_custom_call.1} parent=1 // pred_check_branch
      %37 = sbr.rel (0) target = $region13
    $region12: #{tpu_custom_call.1} parent=1 // pred_region
      %s39 = ssub.s32 2048, 2048
      %40 = vsyncadd [#allocation6], %s39
      %s41 = sshll.u32 [#allocation7], 4
      %s42 = int_to_ptr.vmem [resolvable:$true] %s41
      %47 = dma.hbm_to_vmem [thread:$0]  %s2, 2048, %s42, [#allocation6], 128, 128, 8
    $region13: #{tpu_custom_call.1} parent=1 // pred_fallthru
      _
    // Predicated region
    $region14: #{tpu_custom_call.1} parent=1 // pred_check
      _
    $region15: #{tpu_custom_call.1} parent=1 // pred_check_branch
      %49 = sbr.rel (0) target = $region17
    $region16: #{tpu_custom_call.1} parent=1 // pred_region
      %s51 = ssub.s32 16, 16
      %52 = vsyncadd [#allocation9], %s51
      %s54 = sshll.u32 [#allocation8], 4
      %s55 = int_to_ptr.vmem [resolvable:$true] %s54
      %57 = dma.hbm_to_vmem [thread:$0]  %s3, 16, %s55, [#allocation9]
    $region17: #{tpu_custom_call.1} parent=1 // pred_fallthru
      _
    // Predicated region
    $region18: #{tpu_custom_call.1} parent=1 // pred_check
      _
    $region19: #{tpu_custom_call.1} parent=1 // pred_check_branch
      %59 = sbr.rel (0) target = $region21
    $region20: #{tpu_custom_call.1} parent=1 // pred_region
      %s61 = ssub.s32 32, 32
      %62 = vsyncadd [#allocation9], %s61
      %s64 = sshll.u32 [#allocation10], 4
      %s65 = int_to_ptr.vmem [resolvable:$true] %s64
      %67 = dma.hbm_to_vmem [thread:$0]  %s4, 32, %s65, [#allocation9]
    $region21: #{tpu_custom_call.1} parent=1 // pred_fallthru
      _
    // Predicated region
    $region22: #{tpu_custom_call.1} parent=1 // pred_check
      _
    $region23: #{tpu_custom_call.1} parent=1 // pred_check_branch
      %69 = sbr.rel (0) target = $region25
    $region24: #{tpu_custom_call.1} parent=1 // pred_region
      %70 = dma.done [#allocation3], 128
    $region25: #{tpu_custom_call.1} parent=1 // pred_fallthru
      _
    // Predicated region
    $region26: #{tpu_custom_call.1} parent=1 // pred_check
      _
    $region27: #{tpu_custom_call.1} parent=1 // pred_check_branch
      %72 = sbr.rel (0) target = $region29
    $region28: #{tpu_custom_call.1} parent=1 // pred_region
      %73 = dma.done [#allocation6], 1024
    $region29: #{tpu_custom_call.1} parent=1 // pred_fallthru
      _
    // Predicated region
    $region30: #{tpu_custom_call.1} parent=1 // pred_check
      _
    $region31: #{tpu_custom_call.1} parent=1 // pred_check_branch
      %75 = sbr.rel (0) target = $region33
    $region32: #{tpu_custom_call.1} parent=1 // pred_region
      %76 = dma.done [#allocation6], 2048
    $region33: #{tpu_custom_call.1} parent=1 // pred_fallthru
      _
    // Predicated region
    $region34: #{tpu_custom_call.1} parent=1 // pred_check
      _
    $region35: #{tpu_custom_call.1} parent=1 // pred_check_branch
      %78 = sbr.rel (0) target = $region37
    $region36: #{tpu_custom_call.1} parent=1 // pred_region
      %79 = dma.done [#allocation9], 16
    $region37: #{tpu_custom_call.1} parent=1 // pred_fallthru
      _
    // Predicated region
    $region38: #{tpu_custom_call.1} parent=1 // pred_check
      _
    $region39: #{tpu_custom_call.1} parent=1 // pred_check_branch
      %81 = sbr.rel (0) target = $region41
    $region40: #{tpu_custom_call.1} parent=1 // pred_region
      %82 = dma.done [#allocation9], 32
    $region41: #{tpu_custom_call.1} parent=1 // pred_fallthru
      _
    %v84 = vld [vmem:[#allocation2] sm:$0xff]
    %v85 = vpack.c.bf16 %v84, %v84
    %v86 = vld [vmem:[#allocation5] sm:$0xf]
    %v87 = vld [vmem:[#allocation5 + $0x4] sm:$0xf]
    %v88 = vld [vmem:[#allocation5 + $0x8] sm:$0xf]
    %v89 = vld [vmem:[#allocation5 + $0xc] sm:$0xf]
    %v90 = vld [vmem:[#allocation5 + $0x10] sm:$0xf]
    %v91 = vld [vmem:[#allocation5 + $0x14] sm:$0xf]
    %v92 = vld [vmem:[#allocation5 + $0x18] sm:$0xf]
    %v93 = vld [vmem:[#allocation5 + $0x1c] sm:$0xf]
    %v94 = vld [vmem:[#allocation5 + $0x20] sm:$0xf]
    %v95 = vld [vmem:[#allocation5 + $0x24] sm:$0xf]
    %v96 = vld [vmem:[#allocation5 + $0x28] sm:$0xf]
    %v97 = vld [vmem:[#allocation5 + $0x2c] sm:$0xf]
    %v98 = vld [vmem:[#allocation5 + $0x30] sm:$0xf]
    %v99 = vld [vmem:[#allocation5 + $0x34] sm:$0xf]
    %v100 = vld [vmem:[#allocation5 + $0x38] sm:$0xf]
    %v101 = vld [vmem:[#allocation5 + $0x3c] sm:$0xf]
    %v102 = vld [vmem:[#allocation7] sm:$0xff]
    %v103 = vld [vmem:[#allocation7 + $0x8] sm:$0xff]
    %v104 = vld [vmem:[#allocation7 + $0x10] sm:$0xff]
    %v105 = vld [vmem:[#allocation7 + $0x18] sm:$0xff]
    %v106 = vld [vmem:[#allocation7 + $0x20] sm:$0xff]
    %v107 = vld [vmem:[#allocation7 + $0x28] sm:$0xff]
    %v108 = vld [vmem:[#allocation7 + $0x30] sm:$0xff]
    %v109 = vld [vmem:[#allocation7 + $0x38] sm:$0xff]
    %v110 = vld [vmem:[#allocation7 + $0x40] sm:$0xff]
    %v111 = vld [vmem:[#allocation7 + $0x48] sm:$0xff]
    %v112 = vld [vmem:[#allocation7 + $0x50] sm:$0xff]
    %v113 = vld [vmem:[#allocation7 + $0x58] sm:$0xff]
    %v114 = vld [vmem:[#allocation7 + $0x60] sm:$0xff]
    %v115 = vld [vmem:[#allocation7 + $0x68] sm:$0xff]
    %v116 = vld [vmem:[#allocation7 + $0x70] sm:$0xff]
    %v117 = vld [vmem:[#allocation7 + $0x78] sm:$0xff]
    %119 = vset.pattern.permute.xlu0 0
    %120 = vperm.xlu0 %119, %v102
    %v121 = vpop.permute.xlu0 %120
    %124 = vset.pattern.permute.xlu0 0
    %125 = vperm.xlu0 %124, %v103
    %v126 = vpop.permute.xlu0 %125
    %129 = vset.pattern.permute.xlu0 0
    %130 = vperm.xlu0 %129, %v104
    %v131 = vpop.permute.xlu0 %130
    %134 = vset.pattern.permute.xlu0 0
    %135 = vperm.xlu0 %134, %v105
    %v136 = vpop.permute.xlu0 %135
    %139 = vset.pattern.permute.xlu0 0
    %140 = vperm.xlu0 %139, %v106
    %v141 = vpop.permute.xlu0 %140
    %144 = vset.pattern.permute.xlu0 0
    %145 = vperm.xlu0 %144, %v107
    %v146 = vpop.permute.xlu0 %145
    %149 = vset.pattern.permute.xlu0 0
    %150 = vperm.xlu0 %149, %v108
    %v151 = vpop.permute.xlu0 %150
    %154 = vset.pattern.permute.xlu0 0
    %155 = vperm.xlu0 %154, %v109
    %v156 = vpop.permute.xlu0 %155
    %159 = vset.pattern.permute.xlu0 0
    %160 = vperm.xlu0 %159, %v110
    %v161 = vpop.permute.xlu0 %160
    %164 = vset.pattern.permute.xlu0 0
    %165 = vperm.xlu0 %164, %v111
    %v166 = vpop.permute.xlu0 %165
    %169 = vset.pattern.permute.xlu0 0
    %170 = vperm.xlu0 %169, %v112
    %v171 = vpop.permute.xlu0 %170
    %174 = vset.pattern.permute.xlu0 0
    %175 = vperm.xlu0 %174, %v113
    %v176 = vpop.permute.xlu0 %175
    %179 = vset.pattern.permute.xlu0 0
    %180 = vperm.xlu0 %179, %v114
    %v181 = vpop.permute.xlu0 %180
    %184 = vset.pattern.permute.xlu0 0
    %185 = vperm.xlu0 %184, %v115
    %v186 = vpop.permute.xlu0 %185
    %189 = vset.pattern.permute.xlu0 0
    %190 = vperm.xlu0 %189, %v116
    %v191 = vpop.permute.xlu0 %190
    %194 = vset.pattern.permute.xlu0 0
    %195 = vperm.xlu0 %194, %v117
    %v196 = vpop.permute.xlu0 %195
    %v214 = vunpack.c.l.b16 %v86
    %v215 = vunpack.c.l.b16 %v87
    %v216 = vunpack.c.l.b16 %v88
    %v217 = vunpack.c.l.b16 %v89
    %v218 = vunpack.c.l.b16 %v90
    %v219 = vunpack.c.l.b16 %v91
    %v220 = vunpack.c.l.b16 %v92
    %v221 = vunpack.c.l.b16 %v93
    %v222 = vunpack.c.l.b16 %v94
    %v223 = vunpack.c.l.b16 %v95
    %v224 = vunpack.c.l.b16 %v96
    %v225 = vunpack.c.l.b16 %v97
    %v226 = vunpack.c.l.b16 %v98
    %v227 = vunpack.c.l.b16 %v99
    %v228 = vunpack.c.l.b16 %v100
    %v229 = vunpack.c.l.b16 %v101
    %v230 = vpack.c.b16 %v215, %v214
    %v231 = vpack.c.b16 %v217, %v216
    %v232 = vpack.c.b16 %v219, %v218
    %v233 = vpack.c.b16 %v221, %v220
    %v234 = vpack.c.b16 %v223, %v222
    %v235 = vpack.c.b16 %v225, %v224
    %v236 = vpack.c.b16 %v227, %v226
    %v237 = vpack.c.b16 %v229, %v228
    %vm238 = vcmask 187392
    %v240 = vsel %vm238, %v230, 0
    %v243 = vsel %vm238, %v231, 0
    %v246 = vsel %vm238, %v232, 0
    %v249 = vsel %vm238, %v233, 0
    %v252 = vsel %vm238, %v234, 0
    %v255 = vsel %vm238, %v235, 0
    %v258 = vsel %vm238, %v236, 0
    %v261 = vsel %vm238, %v237, 0
    %v264 = vsel %vm238, %v85, 0
    %266 = vmatprep.subr.bf16.mxu0 0
    %267 = vmatpush1.bf16.xpose.msra.mxu0 %v264
    %268 = vmatprep.subr.bf16.mxu0 0
    %269 = vmatpush1.bf16.xpose.msra.mxu0 0
    %270 = vmatprep.subr.bf16.mxu0 0
    %271 = vmatpush1.bf16.xpose.msra.mxu0 0
    %272 = vmatprep.subr.bf16.mxu0 0
    %273 = vmatpush1.bf16.xpose.msra.mxu0 0
    %274 = vmatprep.subr.bf16.mxu0 0
    %275 = vmatpush1.bf16.xpose.msra.mxu0 0
    %276 = vmatprep.subr.bf16.mxu0 0
    %277 = vmatpush1.bf16.xpose.msra.mxu0 0
    %278 = vmatprep.subr.bf16.mxu0 0
    %279 = vmatpush1.bf16.xpose.msra.mxu0 0
    %280 = vmatprep.subr.bf16.mxu0 0
    %281 = vmatpush1.bf16.xpose.msra.mxu0 0
    %282 = vmatprep.subr.bf16.mxu0 0
    %283 = vmatpush1.bf16.xpose.msra.mxu0 0
    %284 = vmatprep.subr.bf16.mxu0 0
    %285 = vmatpush1.bf16.xpose.msra.mxu0 0
    %286 = vmatprep.subr.bf16.mxu0 0
    %287 = vmatpush1.bf16.xpose.msra.mxu0 0
    %288 = vmatprep.subr.bf16.mxu0 0
    %289 = vmatpush1.bf16.xpose.msra.mxu0 0
    %290 = vmatprep.subr.bf16.mxu0 0
    %291 = vmatpush1.bf16.xpose.msra.mxu0 0
    %292 = vmatprep.subr.bf16.mxu0 0
    %293 = vmatpush1.bf16.xpose.msra.mxu0 0
    %294 = vmatprep.subr.bf16.mxu0 0
    %295 = vmatpush1.bf16.xpose.msra.mxu0 0
    %296 = vmatprep.subr.bf16.mxu0 0
    %297 = vmatpush1.bf16.xpose.msra.mxu0 0
    %298 = vmatprep.mubr.bf16.mxu0 0
    %299 = vmatmul.mubr.bf16.gmra.mrb[0].mxu0 %v240
    %v300 = vpop.f32.mrb[0].mxu0
    %v301 = vadd.f32 %v121, %v300
    %v302 = vpop.f32.mrb[0].mxu0
    %v303 = vpop.f32.mrb[0].mxu0
    %v304 = vadd.f32 %v126, %v303
    %v305 = vpop.f32.mrb[0].mxu0
    %306 = vmatprep.mubr.bf16.mxu0 0
    %307 = vmatmul.mubr.bf16.gmra.mrb[0].mxu0 %v243
    %v308 = vpop.f32.mrb[0].mxu0
    %v309 = vadd.f32 %v131, %v308
    %v310 = vpop.f32.mrb[0].mxu0
    %v311 = vpop.f32.mrb[0].mxu0
    %v312 = vadd.f32 %v136, %v311
    %v313 = vpop.f32.mrb[0].mxu0
    %314 = vmatprep.mubr.bf16.mxu0 0
    %315 = vmatmul.mubr.bf16.gmra.mrb[0].mxu0 %v246
    %v316 = vpop.f32.mrb[0].mxu0
    %v317 = vadd.f32 %v141, %v316
    %v318 = vpop.f32.mrb[0].mxu0
    %v319 = vpop.f32.mrb[0].mxu0
    %v320 = vadd.f32 %v146, %v319
    %v321 = vpop.f32.mrb[0].mxu0
    %322 = vmatprep.mubr.bf16.mxu0 0
    %323 = vmatmul.mubr.bf16.gmra.mrb[0].mxu0 %v249
    %v324 = vpop.f32.mrb[0].mxu0
    %v325 = vadd.f32 %v151, %v324
    %v326 = vpop.f32.mrb[0].mxu0
    %v327 = vpop.f32.mrb[0].mxu0
    %v328 = vadd.f32 %v156, %v327
    %v329 = vpop.f32.mrb[0].mxu0
    %330 = vmatprep.mubr.bf16.mxu0 0
    %331 = vmatmul.mubr.bf16.gmra.mrb[0].mxu0 %v252
    %v332 = vpop.f32.mrb[0].mxu0
    %v333 = vadd.f32 %v161, %v332
    %v334 = vpop.f32.mrb[0].mxu0
    %v335 = vpop.f32.mrb[0].mxu0
    %v336 = vadd.f32 %v166, %v335
    %v337 = vpop.f32.mrb[0].mxu0
    %338 = vmatprep.mubr.bf16.mxu0 0
    %339 = vmatmul.mubr.bf16.gmra.mrb[0].mxu0 %v255
    %v340 = vpop.f32.mrb[0].mxu0
    %v341 = vadd.f32 %v171, %v340
    %v342 = vpop.f32.mrb[0].mxu0
    %v343 = vpop.f32.mrb[0].mxu0
    %v344 = vadd.f32 %v176, %v343
    %v345 = vpop.f32.mrb[0].mxu0
    %346 = vmatprep.mubr.bf16.mxu0 0
    %347 = vmatmul.mubr.bf16.gmra.mrb[0].mxu0 %v258
    %v348 = vpop.f32.mrb[0].mxu0
    %v349 = vadd.f32 %v181, %v348
    %v350 = vpop.f32.mrb[0].mxu0
    %v351 = vpop.f32.mrb[0].mxu0
    %v352 = vadd.f32 %v186, %v351
    %v353 = vpop.f32.mrb[0].mxu0
    %354 = vmatprep.mubr.bf16.mxu0 0
    %355 = vmatmul.mubr.bf16.gmra.mrb[0].mxu0 %v261
    %v356 = vpop.f32.mrb[0].mxu0
    %v357 = vadd.f32 %v191, %v356
    %v358 = vpop.f32.mrb[0].mxu0
    %v359 = vpop.f32.mrb[0].mxu0
    %v360 = vadd.f32 %v196, %v359
    %v361 = vpop.f32.mrb[0].mxu0
    %362 = vdwg.mxu0
    %v363 = vmul.f32 %v301, 0.5
    %v364 = vmul.f32 %v304, 0.5
    %v365 = vmul.f32 %v309, 0.5
    %v366 = vmul.f32 %v312, 0.5
    %v367 = vmul.f32 %v317, 0.5
    %v368 = vmul.f32 %v320, 0.5
    %v369 = vmul.f32 %v325, 0.5
    %v370 = vmul.f32 %v328, 0.5
    %v371 = vmul.f32 %v333, 0.5
    %v372 = vmul.f32 %v336, 0.5
    %v373 = vmul.f32 %v341, 0.5
    %v374 = vmul.f32 %v344, 0.5
    %v375 = vmul.f32 %v349, 0.5
    %v376 = vmul.f32 %v352, 0.5
    %v377 = vmul.f32 %v357, 0.5
    %v378 = vmul.f32 %v360, 0.5
    %v379 = vtanh.pop %v363
    %v380 = vtanh.pop %v364
    %v381 = vtanh.pop %v365
    %v382 = vtanh.pop %v366
    %v383 = vtanh.pop %v367
    %v384 = vtanh.pop %v368
    %v385 = vtanh.pop %v369
    %v386 = vtanh.pop %v370
    %v387 = vtanh.pop %v371
    %v388 = vtanh.pop %v372
    %v389 = vtanh.pop %v373
    %v390 = vtanh.pop %v374
    %v391 = vtanh.pop %v375
    %v392 = vtanh.pop %v376
    %v393 = vtanh.pop %v377
    %v394 = vtanh.pop %v378
    %v395 = vmul.f32 %v379, 0.5
    %v396 = vmul.f32 %v380, 0.5
    %v397 = vmul.f32 %v381, 0.5
    %v398 = vmul.f32 %v382, 0.5
    %v399 = vmul.f32 %v383, 0.5
    %v400 = vmul.f32 %v384, 0.5
    %v401 = vmul.f32 %v385, 0.5
    %v402 = vmul.f32 %v386, 0.5
    %v403 = vmul.f32 %v387, 0.5
    %v404 = vmul.f32 %v388, 0.5
    %v405 = vmul.f32 %v389, 0.5
    %v406 = vmul.f32 %v390, 0.5
    %v407 = vmul.f32 %v391, 0.5
    %v408 = vmul.f32 %v392, 0.5
    %v409 = vmul.f32 %v393, 0.5
    %v410 = vmul.f32 %v394, 0.5
    %v411 = vadd.f32 %v395, 0.5
    %v412 = vadd.f32 %v396, 0.5
    %v413 = vadd.f32 %v397, 0.5
    %v414 = vadd.f32 %v398, 0.5
    %v415 = vadd.f32 %v399, 0.5
    %v416 = vadd.f32 %v400, 0.5
    %v417 = vadd.f32 %v401, 0.5
    %v418 = vadd.f32 %v402, 0.5
    %v419 = vadd.f32 %v403, 0.5
    %v420 = vadd.f32 %v404, 0.5
    %v421 = vadd.f32 %v405, 0.5
    %v422 = vadd.f32 %v406, 0.5
    %v423 = vadd.f32 %v407, 0.5
    %v424 = vadd.f32 %v408, 0.5
    %v425 = vadd.f32 %v409, 0.5
    %v426 = vadd.f32 %v410, 0.5
    %v427 = vld [vmem:[#allocation8] sm:$0x1]
    %v428 = vpack.c.bf16 %v412, %v411
    %v429 = vpack.c.bf16 %v414, %v413
    %v430 = vpack.c.bf16 %v416, %v415
    %v431 = vpack.c.bf16 %v418, %v417
    %v432 = vpack.c.bf16 %v420, %v419
    %v433 = vpack.c.bf16 %v422, %v421
    %v434 = vpack.c.bf16 %v424, %v423
    %v435 = vpack.c.bf16 %v426, %v425
    %v436 = vld [vmem:[#allocation10] sm:$0x3]
    %438 = vset.pattern.permute.xlu0 0
    %439 = vperm.xlu0 %438, %v436
    %v440 = vpop.permute.xlu0 %439
    %442 = vmatprep.subr.bf16.mxu0 0
    %443 = vmatpush1.bf16.msra.mxu0 %v428
    %444 = vmatprep.subr.bf16.mxu0 0
    %445 = vmatpush1.bf16.msra.mxu0 %v429
    %446 = vmatprep.subr.bf16.mxu0 0
    %447 = vmatpush1.bf16.msra.mxu0 %v430
    %448 = vmatprep.subr.bf16.mxu0 0
    %449 = vmatpush1.bf16.msra.mxu0 %v431
    %450 = vmatprep.subr.bf16.mxu0 0
    %451 = vmatpush1.bf16.msra.mxu0 %v432
    %452 = vmatprep.subr.bf16.mxu0 0
    %453 = vmatpush1.bf16.msra.mxu0 %v433
    %454 = vmatprep.subr.bf16.mxu0 0
    %455 = vmatpush1.bf16.msra.mxu0 %v434
    %456 = vmatprep.subr.bf16.mxu0 0
    %457 = vmatpush1.bf16.msra.mxu0 %v435
    %458 = vmatprep.subr.bf16.mxu0 0
    %459 = vmatpush1.bf16.msra.mxu0 0
    %460 = vmatprep.subr.bf16.mxu0 0
    %461 = vmatpush1.bf16.msra.mxu0 0
    %462 = vmatprep.subr.bf16.mxu0 0
    %463 = vmatpush1.bf16.msra.mxu0 0
    %464 = vmatprep.subr.bf16.mxu0 0
    %465 = vmatpush1.bf16.msra.mxu0 0
    %466 = vmatprep.subr.bf16.mxu0 0
    %467 = vmatpush1.bf16.msra.mxu0 0
    %468 = vmatprep.subr.bf16.mxu0 0
    %469 = vmatpush1.bf16.msra.mxu0 0
    %470 = vmatprep.subr.bf16.mxu0 0
    %471 = vmatpush1.bf16.msra.mxu0 0
    %472 = vmatprep.subr.bf16.mxu0 0
    %473 = vmatpush1.bf16.msra.mxu0 0
    %474 = vmatprep.mubr.bf16.mxu0 0
    %475 = vmatmul.mubr.bf16.gmra.mrb[0].mxu0 %v427
    %v476 = vpop.f32.mrb[0].mxu0
    %v477 = vadd.f32 %v440, %v476
    %v478 = vpop.f32.mrb[0].mxu0
    %v479 = vpop.f32.mrb[0].mxu0
    %v480 = vpop.f32.mrb[0].mxu0
    %481 = vdwg.mxu0
    %vm482 = vcmask 58368
    %483 = vst.msk [vmem:[#allocation11] sm:$0x3] %vm482, %v477
    // Predicated region
    $region42: #{tpu_custom_call.1} parent=1 // pred_check
      _
    $region43: #{tpu_custom_call.1} parent=1 // pred_check_branch
      %485 = sbr.rel (0) target = $region45
    $region44: #{tpu_custom_call.1} parent=1 // pred_region
      %s487 = ssub.s32 32, 32
      %488 = vsyncadd [#allocation4], %s487
      %s490 = sshll.u32 [#allocation11], 4
      %s491 = int_to_ptr.vmem [resolvable:$true] %s490
      %493 = dma.vmem_to_hbm [thread:$0]  %s491, 32, %s5, [#allocation4]
    $region45: #{tpu_custom_call.1} parent=1 // pred_fallthru
      _
    // Predicated region
    $region46: #{tpu_custom_call.1} parent=1 // pred_check
      _
    $region47: #{tpu_custom_call.1} parent=1 // pred_check_branch
      %495 = sbr.rel (0) target = $region49
    $region48: #{tpu_custom_call.1} parent=1 // pred_region
      %496 = dma.done [#allocation4], 32
    $region49: #{tpu_custom_call.1} parent=1 // pred_fallthru
      _
    %497 = vsyncpa [#allocation3], 1
    %498 = vsyncpa [#allocation6], 1
    %499 = vsyncpa [#allocation9], 1
    %500 = vsyncpa [#allocation4], 1

</llo_original>
